<compile_context>
chip_gen: v7x
topology: tpu7x:2x2x1
jax: 0.10.0
libtpu: 0.0.40
codegen_flags: <defaults>
</compile_context>

<pallas_src>
import functools
import math

import jax
import jax.numpy as jnp
from jax.experimental import pallas as pl
from jax.experimental.pallas import tpu as pltpu


def _build_pe_table(d_model: int, max_len: int) -> jnp.ndarray:
    """Deterministic sin/cos table, exactly as in the PyTorch __init__ (note 35000.0)."""
    position = jnp.arange(0, max_len, dtype=jnp.float32)[:, None]            # (max_len, 1)
    div_term = jnp.exp(
        jnp.arange(0, d_model, 2, dtype=jnp.float32) * (-math.log(35000.0) / d_model)
    )                                                                         # (d_model/2,)
    angles = position * div_term                                              # (max_len, d_model/2)
    pe = jnp.zeros((max_len, d_model), dtype=jnp.float32)
    pe = pe.at[:, 0::2].set(jnp.sin(angles))
    pe = pe.at[:, 1::2].set(jnp.cos(angles))
    return pe                                                                 # (max_len, d_model)


# --------------------------------------------------------------------------- kernels
def _pe_add_kernel(x_ref, pe_ref, o_ref, *, lane_tile_batch: int):
    """Eval-mode kernel: out = x + pe (dropout is identity). No seed input."""
    pe = pe_ref[...]
    if lane_tile_batch > 1:
        # Flattened path (D not lane-aligned): pe_wide[s, b*D + d] == pe[s, d],
        # matching the row-major flatten of (S, B, D).
        pe = jnp.tile(pe, (1, lane_tile_batch))
    o_ref[...] = (x_ref[...] + pe).astype(o_ref.dtype)


def _pe_add_dropout_kernel(seed_ref, x_ref, pe_ref, o_ref, *, p: float,
                           lane_tile_batch: int):
    """Training-mode kernel: out = inverted_dropout(x + pe, p) with the HW PRNG."""
    pe = pe_ref[...]
    if lane_tile_batch > 1:
        pe = jnp.tile(pe, (1, lane_tile_batch))
    y = x_ref[...] + pe

    if p >= 1.0:
        # p == 1.0 drops everything (and avoids uint32 threshold overflow).
        y = jnp.zeros_like(y)
    else:
        # Decorrelate per-block streams: mix the grid index into the seed
        # (plain seed + program_id gives adjacent, potentially correlated seeds).
        pltpu.prng_seed(seed_ref[0] * pl.num_programs(0) + pl.program_id(0))
        bits = pltpu.bitcast(pltpu.prng_random_bits(y.shape), jnp.uint32)
        # Keep prob = (2^32 - round(p*2^32)) / 2^32: O(2^-32) bias vs exactly 1-p.
        # This bias is intentional and negligible; do not "fix" the comparison.
        thresh = jnp.uint32(min(int(round(p * float(2 ** 32))), 2 ** 32 - 1))
        keep = bits >= thresh
        y = jnp.where(keep, y * (1.0 / (1.0 - p)), jnp.zeros_like(y))

    o_ref[...] = y.astype(o_ref.dtype)


# --------------------------------------------------------------------------- sizing
def _vmem_capacity_bytes() -> int:
    """Physical VMEM per core; conservative (v7x-sized) fallback if the query fails."""
    try:
        return int(getattr(pltpu.get_tpu_info(), "vmem_capacity_bytes", 64 << 20))
    except Exception:
        return 64 << 20


def _choose_seq_tile(S: int, row_io_bytes: int, x_tile_target: int) -> int:
    """Largest multiple-of-8 seq tile whose x tile is ~x_tile_target bytes."""
    ts = max(8, (x_tile_target // max(row_io_bytes, 1)) // 8 * 8)
    ts = min(ts, S)
    # Aim for >= 4 grid steps (>= 2 per TensorCore on v7x) when S permits, so
    # input/output DMAs overlap across steps and the two cores stay balanced.
    # v5e/v6e (single TC) just get a slightly finer pipeline, which is harmless.
    if S >= 32 and pl.cdiv(S, ts) < 4:
        ts = max(8, (pl.cdiv(S, 4) + 7) // 8 * 8)
    return min(ts, S)


# --------------------------------------------------------------------------- wrapper
def positional_encoding_forward(x, pe_table, *, p=0.1, training=False, seed=0,
                                ts=None, jnp_fallback_bytes=0):
    """x: (S, B, D); pe_table: (max_len, D) float32. Returns (S, B, D) in x.dtype."""
    S, B, D = x.shape
    assert pe_table.shape[0] >= S and pe_table.shape[1] == D
    p = float(p)
    apply_dropout = bool(training) and p > 0.0

    # Optional tiny-problem escape hatch (eval only): below a few hundred KiB the
    # pallas_call fixed overhead dominates and XLA's fused add is faster.
    # Disabled by default (0) so callers/tests always exercise the kernel.
    if (not apply_dropout) and jnp_fallback_bytes \
            and x.size * x.dtype.itemsize < jnp_fallback_bytes:
        return (x + pe_table[:S].astype(x.dtype)[:, None, :]).astype(x.dtype)

    pe_s = pe_table[:S].astype(x.dtype)      # pe in x.dtype: no f32 round-trip / half traffic
    use_3d = (D % 128 == 0)                  # lane-aligned D -> sublane broadcast path
    itm = jnp.dtype(x.dtype).itemsize

    # --- generation-aware tile / VMEM sizing ------------------------------------
    vmem_cap = _vmem_capacity_bytes()
    if vmem_cap >= (100 << 20):              # v5e / v6e: 128 MiB VMEM
        x_tile_target = (8 << 20) if apply_dropout else (12 << 20)
        vmem_cap_limit = 96 << 20
    else:                                    # v7x: 64 MiB VMEM
        x_tile_target = (3 << 20) if apply_dropout else (4 << 20)
        vmem_cap_limit = 48 << 20

    # Bytes per seq row resident in one VMEM x/out tile buffer (the 3-D path pads
    # the batch axis up to a multiple of 8 sublanes).
    b_vmem = ((B + 7) // 8) * 8 if use_3d else B
    row_io = b_vmem * D * itm
    row_pe = D * itm

    if ts is None:
        ts = _choose_seq_tile(S, row_io, x_tile_target)
    ts = max(1, min(int(ts), S))
    grid = (pl.cdiv(S, ts),)

    # --- VMEM accounting: double-buffered x/out/pe streams + in-kernel temps ----
    tile_io, tile_pe = ts * row_io, ts * row_pe
    tmp_bytes = tile_io                                   # y temporary
    if not use_3d and B > 1:
        tmp_bytes += tile_io                              # lane-tiled pe copy (flatten path)
    if apply_dropout:
        tmp_bytes += ts * b_vmem * D * 4 + tile_io        # uint32 random bits + keep/select
    vmem_needed = 2 * tile_io + 2 * tile_io + 2 * tile_pe + tmp_bytes
    vmem_limit = int(min(max(vmem_needed + (8 << 20), 32 << 20), vmem_cap_limit))

    # --- BlockSpecs ---------------------------------------------------------------
    if use_3d:
        # 3-D blocks: pe broadcasts over the batch (sublane) axis inside the kernel.
        x_in, pe_in = x, pe_s[:, None, :]                           # pe: (S, 1, D)
        x_spec = pl.BlockSpec((ts, B, D), lambda i: (i, 0, 0))
        pe_spec = pl.BlockSpec((ts, 1, D), lambda i: (i, 0, 0))
        out_shape = jax.ShapeDtypeStruct((S, B, D), x.dtype)
        lane_tile_batch = 1
    else:
        # Flattened lane-dense layout; row-major reshape is free.
        x_in, pe_in = x.reshape(S, B * D), pe_s
        x_spec = pl.BlockSpec((ts, B * D), lambda i: (i, 0))
        pe_spec = pl.BlockSpec((ts, D), lambda i: (i, 0))
        out_shape = jax.ShapeDtypeStruct((S, B * D), x.dtype)
        lane_tile_batch = B
    out_spec = x_spec

    if apply_dropout:
        kernel = functools.partial(_pe_add_dropout_kernel, p=p,
                                   lane_tile_batch=lane_tile_batch)
        in_specs = [pl.BlockSpec(memory_space=pltpu.SMEM), x_spec, pe_spec]
        args = (jnp.asarray([seed], dtype=jnp.int32), x_in, pe_in)
    else:
        kernel = functools.partial(_pe_add_kernel, lane_tile_batch=lane_tile_batch)
        in_specs = [x_spec, pe_spec]
        args = (x_in, pe_in)

    out = pl.pallas_call(
        kernel,
        out_shape=out_shape,
        grid=grid,
        in_specs=in_specs,
        out_specs=out_spec,
        compiler_params=pltpu.CompilerParams(
            dimension_semantics=("parallel",),
            vmem_limit_bytes=vmem_limit,
        ),
    )(*args)

    return out.reshape(S, B, D)


if __name__ == "__main__":
    key = jax.random.PRNGKey(0)

    # Case 1: d_model < 128 -> flattened (S, B*D) lane-dense path (seq=8, batch=2, d=32).
    S1, B1, D1 = 8, 2, 32
    x1 = jax.random.normal(jax.random.fold_in(key, 0), (S1, B1, D1), dtype=jnp.float32)
    pe1 = _build_pe_table(D1, 64)
    y1 = jax.block_until_ready(positional_encoding_forward(x1, pe1, p=0.1, training=False))
    ref1 = x1 + pe1[:S1][:, None, :]
    assert jnp.allclose(y1, ref1, atol=1e-6), "case1 eval mismatch vs reference"

    # Case 2: d_model % 128 == 0 -> 3-D sublane-broadcast path (seq=16, batch=8, d=128).
    S2, B2, D2 = 16, 8, 128
    x2 = jax.random.normal(jax.random.fold_in(key, 1), (S2, B2, D2), dtype=jnp.float32)
    pe2 = _build_pe_table(D2, 32)
    y2 = jax.block_until_ready(positional_encoding_forward(x2, pe2, p=0.1, training=False))
    ref2 = x2 + pe2[:S2][:, None, :]
    assert jnp.allclose(y2, ref2, atol=1e-6), "case2 eval mismatch vs reference"

    # Training-mode forward uses the on-chip PRNG (TPU backend only; no CPU lowering
    # for prng_seed).  TODO(synk): dropout randomness cannot reproduce PyTorch's RNG stream.
    if jax.default_backend() == "tpu":
        for xx, rr in ((x1, ref1), (x2, ref2)):
            yt = jax.block_until_ready(
                positional_encoding_forward(
                    xx, _build_pe_table(xx.shape[2], 64), p=0.1, training=True, seed=1234
                )
            )
            kept = yt != 0.0
            # Kept values are exactly (x + pe) / (1 - p).
            assert jnp.allclose(
                jnp.where(kept, yt * 0.9, 0.0), jnp.where(kept, rr, 0.0), atol=1e-5
            ), "dropout-scaled values mismatch"

    print("KERNEL_OK")
</pallas_src>

<mosaic_0001>
module attributes {stable_mosaic.version = 11 : i64} {
  func.func @_pe_add_kernel(%arg0: i32, %arg1: memref<8x64xf32, #tpu.memory_space<vmem>>, %arg2: memref<8x32xf32, #tpu.memory_space<vmem>>, %arg3: memref<8x64xf32, #tpu.memory_space<vmem>>) attributes {dimension_semantics = [#tpu.dimension_semantics<parallel>], iteration_bounds = array<i64: 1>, scalar_prefetch = 0 : i64, scratch_operands = 0 : i64, tpu.core_type = #tpu.core_type<tc>, window_params = [{transform_indices = @transform_0, window_bounds = array<i64: 8, 64>}, {transform_indices = @transform_1, window_bounds = array<i64: 8, 32>}, {transform_indices = @transform_2, window_bounds = array<i64: 8, 64>}]} {
    %c0 = arith.constant 0 : index
    %c0_0 = arith.constant 0 : index
    %0 = vector.load %arg2[%c0, %c0_0] : memref<8x32xf32, #tpu.memory_space<vmem>>, vector<8x32xf32>
    %1 = tpu.concatenate %0, %0 in 1 : vector<8x32xf32>, vector<8x32xf32> -> vector<8x64xf32>
    %c0_1 = arith.constant 0 : index
    %c0_2 = arith.constant 0 : index
    %2 = vector.load %arg1[%c0_1, %c0_2] : memref<8x64xf32, #tpu.memory_space<vmem>>, vector<8x64xf32>
    %3 = arith.addf %2, %1 : vector<8x64xf32>
    %c0_3 = arith.constant 0 : index
    %c0_4 = arith.constant 0 : index
    %4 = vector.load %arg3[%c0_3, %c0_4] : memref<8x64xf32, #tpu.memory_space<vmem>>, vector<8x64xf32>
    tpu.vector_store %arg3[%c0_3, %c0_4], %3 {strides = array<i32>} : memref<8x64xf32, #tpu.memory_space<vmem>>, vector<8x64xf32>,
    return
  }
  func.func @transform_0(%arg0: i32) -> (i32, i32) {
    %c0_i32 = arith.constant 0 : i32
    %c0_i32_0 = arith.constant 0 : i32
    return %arg0, %c0_i32 : i32, i32
  }
  func.func @transform_1(%arg0: i32) -> (i32, i32) {
    %c0_i32 = arith.constant 0 : i32
    %c0_i32_0 = arith.constant 0 : i32
    return %arg0, %c0_i32 : i32, i32
  }
  func.func @transform_2(%arg0: i32) -> (i32, i32) {
    %c0_i32 = arith.constant 0 : i32
    %c0_i32_0 = arith.constant 0 : i32
    return %arg0, %c0_i32 : i32, i32
  }
}

</mosaic_0001>

<llo_original>
// kernel: tpu_custom_call.1
$region0: #{tpu_custom_call.1}
  #allocation0 [shape = 'u32[]', space=smem, size = 0x4, offset = 0x4, fixed_abs, tag = 'smem constant byte address 0x4 - core index']
  #allocation1 [shape = 'u32[144,128]{1,0:T(1,128)}', space=vmem, size = 0x12000, scoped, tag = 'internal scratch']
  %s0 = inlined_call_operand.hbm [shape: f32[8,64], index: 0, kind: input, shape index: {}]
  %s1 = inlined_call_operand.hbm [shape: f32[8,32], index: 1, kind: input, shape index: {}]
  %s2 = inlined_call_operand.hbm [shape: f32[8,64], index: 2, kind: output, shape index: {}]
  %s3 = sld [smem:[#allocation0]]
  $region26: #{tpu_custom_call.1} parent=0
    _
  %s5 = ssub.s32 1, %s3
  %s6 = scalar_select 0, %s5, %s3
  $region1: #{tpu_custom_call.1} parent=0
    #allocation2 [shape = 'u8[4096]{0}', space=vmem, size = 0x1000, scoped, tag = 'input window, operand 0, single buffered']
    #allocation3 [shape = 's32[1]{0}', space=sflag, size = 0x4, scoped, tag = 'scoped memory for tpu_custom_call.1']
    #allocation4 [shape = 's32[1]{0}', space=sflag, size = 0x4, scoped, tag = 'scoped memory for tpu_custom_call.1']
    #allocation5 [shape = 'u8[4096]{0}', space=vmem, size = 0x1000, scoped, tag = 'input window, operand 1, single buffered']
    #allocation6 [shape = 's32[1]{0}', space=sflag, size = 0x4, scoped, tag = 'scoped memory for tpu_custom_call.1']
    #allocation7 [shape = 'u8[4096]{0}', space=vmem, size = 0x1000, scoped, tag = 'output window, operand 0, single buffered']
    %7 = vsyncpa [#allocation3], 0
    %8 = vsyncpa [#allocation6], 0
    %9 = vsyncpa [#allocation4], 0
    // Predicated region
    $region2: #{tpu_custom_call.1} parent=1 // pred_check
      _
    $region3: #{tpu_custom_call.1} parent=1 // pred_check_branch
      %11 = sbr.rel (0) target = $region5
    $region4: #{tpu_custom_call.1} parent=1 // pred_region
      %s13 = ssub.s32 128, 128
      %14 = vsyncadd [#allocation3], %s13
      %s16 = sshll.u32 [#allocation2], 4
      %s17 = int_to_ptr.vmem [resolvable:$true] %s16
      %19 = dma.hbm_to_vmem [thread:$0]  %s0, 128, %s17, [#allocation3]
    $region5: #{tpu_custom_call.1} parent=1 // pred_fallthru
      _
    // Predicated region
    $region6: #{tpu_custom_call.1} parent=1 // pred_check
      _
    $region7: #{tpu_custom_call.1} parent=1 // pred_check_branch
      %21 = sbr.rel (0) target = $region9
    $region8: #{tpu_custom_call.1} parent=1 // pred_region
      %s23 = ssub.s32 128, 128
      %24 = vsyncadd [#allocation6], %s23
      %s26 = sshll.u32 [#allocation5], 4
      %s27 = int_to_ptr.vmem [resolvable:$true] %s26
      %29 = dma.hbm_to_vmem [thread:$0]  %s1, 128, %s27, [#allocation6]
    $region9: #{tpu_custom_call.1} parent=1 // pred_fallthru
      _
    // Predicated region
    $region10: #{tpu_custom_call.1} parent=1 // pred_check
      _
    $region11: #{tpu_custom_call.1} parent=1 // pred_check_branch
      %31 = sbr.rel (0) target = $region13
    $region12: #{tpu_custom_call.1} parent=1 // pred_region
      %32 = dma.done [#allocation3], 128
    $region13: #{tpu_custom_call.1} parent=1 // pred_fallthru
      _
    // Predicated region
    $region14: #{tpu_custom_call.1} parent=1 // pred_check
      _
    $region15: #{tpu_custom_call.1} parent=1 // pred_check_branch
      %34 = sbr.rel (0) target = $region17
    $region16: #{tpu_custom_call.1} parent=1 // pred_region
      %35 = dma.done [#allocation6], 128
    $region17: #{tpu_custom_call.1} parent=1 // pred_fallthru
      _
    %v36 = vld [vmem:[#allocation5] sm:$0xff]
    %38 = vrot.lane.b32.xlu0 %v36, 32
    %v39 = vpop.permute.xlu0 %38
    %vm41 = vcmask 261120
    %v42 = vsel %vm41, %v36, %v39
    %v43 = vld [vmem:[#allocation2] sm:$0xff]
    %v44 = vadd.f32 %v43, %v42
    %vm45 = vcmask 523264
    %46 = vst.msk [vmem:[#allocation7] sm:$0xff] %vm45, %v44
    // Predicated region
    $region18: #{tpu_custom_call.1} parent=1 // pred_check
      _
    $region19: #{tpu_custom_call.1} parent=1 // pred_check_branch
      %48 = sbr.rel (0) target = $region21
    $region20: #{tpu_custom_call.1} parent=1 // pred_region
      %s50 = ssub.s32 128, 128
      %51 = vsyncadd [#allocation4], %s50
      %s53 = sshll.u32 [#allocation7], 4
      %s54 = int_to_ptr.vmem [resolvable:$true] %s53
      %56 = dma.vmem_to_hbm [thread:$0]  %s54, 128, %s2, [#allocation4]
    $region21: #{tpu_custom_call.1} parent=1 // pred_fallthru
      _
    // Predicated region
    $region22: #{tpu_custom_call.1} parent=1 // pred_check
      _
    $region23: #{tpu_custom_call.1} parent=1 // pred_check_branch
      %58 = sbr.rel (0) target = $region25
    $region24: #{tpu_custom_call.1} parent=1 // pred_region
      %59 = dma.done [#allocation4], 128
    $region25: #{tpu_custom_call.1} parent=1 // pred_fallthru
      _
    %60 = vsyncpa [#allocation3], 1
    %61 = vsyncpa [#allocation6], 1
    %62 = vsyncpa [#allocation4], 1

</llo_original>
